<compile_context>
chip_gen: v6e
topology: v6e:2x2x1
jax: 0.10.0
libtpu: 0.0.40
codegen_flags: <defaults>
</compile_context>

<pallas_src>
import jax
import jax.numpy as jnp
import numpy as np
from jax import lax
from jax.experimental import pallas as pl
from jax.experimental.pallas import tpu as pltpu


# -----------------------------------------------------------------------------
# Pallas kernel: whole MLP + tanh action squashing for one batch tile.
#   obs_ref:   (Bt, obs_dim)  f32, batch-major tile (contiguous DMA from HBM)
#   w1:        (h1, obs_dim)  f32        b1: (h1, 1) f32
#   w2:        (h2, h1)       matmul_dt  b2: (h2, 1) f32
#   w3:        (act_dim, h2)  matmul_dt  b3: (act_dim, 1) f32
#   scale/offset: (act_dim, 1) f32
#   out_ref:   (act_dim, Bt)  f32, feature-major (batch on the lane axis)
# -----------------------------------------------------------------------------
def _determ_policy_kernel(obs_ref,
                          w1_ref, b1_ref,
                          w2_ref, b2_ref,
                          w3_ref, b3_ref,
                          scale_ref, offset_ref,
                          out_ref):
    x = obs_ref[...]                                         # (Bt, obs_dim) f32

    # Layer 1: contract obs_dim of both operands -> feature-major (h1, Bt).
    # (Same "contract last dim of both" pattern as q @ k.T in flash attention;
    #  Mosaic handles the transposed MXU operand.)  Kept in f32 (K = obs_dim).
    h = lax.dot_general(w1_ref[...], x, (((1,), (1,)), ((), ())),
                        preferred_element_type=jnp.float32)   # (h1, Bt) f32
    w2 = w2_ref[...]
    h = jnp.maximum(h + b1_ref[...], 0.0).astype(w2.dtype)    # ReLU, one cast

    # Layer 2 + ReLU (bf16 MXU fast path when matmul_dtype=bf16, f32 accumulate).
    w3 = w3_ref[...]
    h = jnp.dot(w2, h, preferred_element_type=jnp.float32)    # (h2, Bt) f32
    h = jnp.maximum(h + b2_ref[...], 0.0).astype(w3.dtype)

    # Layer 3 (output activation = Identity).
    y = jnp.dot(w3, h, preferred_element_type=jnp.float32)    # (act_dim, Bt)
    y = y + b3_ref[...]

    # action = scale * tanh(y) + offset   (lane-dense, EUP tanh)
    out_ref[...] = (scale_ref[...] * jnp.tanh(y)
                    + offset_ref[...]).astype(out_ref.dtype)


# -----------------------------------------------------------------------------
# Wrapper.
# -----------------------------------------------------------------------------
def determ_policy_forward(obs, params, act_high, act_low, *,
                          batch_tile=8192, matmul_dtype=jnp.bfloat16,
                          feature_major_output=False):
    """DetermPolicy forward pass with a Pallas TPU kernel.

    obs:          [B, obs_dim] float32 (batch-major, used as-is: no pad/transpose)
    params:       dict with w1 [h1, obs_dim], b1 [h1, 1], w2 [h2, h1], b2 [h2, 1],
                  w3 [act_dim, h2], b3 [act_dim, 1]  (torch nn.Linear layout)
    act_high/low: [act_dim, 1] float32
    returns:      [B, act_dim] float32 (or lane-dense [act_dim, B] if
                  feature_major_output=True).
    """
    B, obs_dim = obs.shape
    h1 = params["w1"].shape[0]
    h2 = params["w2"].shape[0]
    act_dim = params["w3"].shape[0]

    # --- Tile selection ------------------------------------------------------
    lane = 128
    max_tile = max(lane, pl.cdiv(int(batch_tile), lane) * lane)   # user cap
    b_lanes = pl.cdiv(B, lane) * lane
    # Half the (lane-rounded) batch, rounded up to a lane multiple: guarantees
    # >= 2 grid steps whenever B > 128 (v7x has 2 TensorCores; "parallel" only
    # shards when grid >= 2) while still letting the tile grow with B.
    half = pl.cdiv(pl.cdiv(b_lanes, 2), lane) * lane
    tile = int(min(max_tile, half))
    grid = (pl.cdiv(B, tile),)

    # --- One-time (resident) operand prep ------------------------------------
    # w2/w3 cast to the matmul dtype ONCE here; they are fetched once and stay
    # resident across grid steps (constant index_map), so no per-step casts/DMA.
    w1 = params["w1"]                          # f32: layer-1 matmul stays f32
    w2 = params["w2"].astype(matmul_dtype)
    w3 = params["w3"].astype(matmul_dtype)
    scale = (act_high - act_low) * 0.5         # (act_dim, 1)
    offset = (act_high + act_low) * 0.5        # (act_dim, 1)

    full = lambda shape: pl.BlockSpec(shape, lambda i: (0, 0))

    out_fm = pl.pallas_call(
        _determ_policy_kernel,
        out_shape=jax.ShapeDtypeStruct((act_dim, B), jnp.float32),
        grid=grid,
        in_specs=[
            # obs: batch-major tile straight from HBM (ragged last block is
            # clamped on read; its garbage rows only feed masked output cols).
            pl.BlockSpec((tile, obs_dim), lambda i: (i, 0)),
            full((h1, obs_dim)), full((h1, 1)),        # w1, b1
            full((h2, h1)),      full((h2, 1)),        # w2, b2
            full((act_dim, h2)), full((act_dim, 1)),   # w3, b3
            full((act_dim, 1)),  full((act_dim, 1)),   # scale, offset
        ],
        # Lane-dense output: batch on the 128-lane axis; trailing partial
        # block writes past B are masked by Pallas.
        out_specs=pl.BlockSpec((act_dim, tile), lambda i: (0, i)),
        compiler_params=pltpu.CompilerParams(
            dimension_semantics=("parallel",),
            vmem_limit_bytes=32 * 1024 * 1024),   # v5e default is only 16 MiB
    )(obs, w1, params["b1"], w2, params["b2"], w3, params["b3"], scale, offset)

    if feature_major_output:
        return out_fm                 # (act_dim, B), lane-dense, no relayout
    return out_fm.T                   # module contract: [B, act_dim]


# -----------------------------------------------------------------------------
# Deterministic parameter construction mirroring init_weights():
#   Linear weights ~ U(-sqrt(6/(fan_in+fan_out)), +sqrt(6/(fan_in+fan_out))),
#   biases = 0.  Stored in torch nn.Linear layout [out, in]; biases as [out, 1].
# -----------------------------------------------------------------------------
def make_params(key, sizes):
    params = {}
    keys = jax.random.split(key, len(sizes) - 1)
    for j in range(len(sizes) - 1):
        fan_in, fan_out = sizes[j], sizes[j + 1]
        w_bound = float(np.sqrt(6.0 / (fan_in + fan_out)))
        w = jax.random.uniform(keys[j], (fan_out, fan_in), jnp.float32,
                               minval=-w_bound, maxval=w_bound)
        b = jnp.zeros((fan_out, 1), jnp.float32)
        params[f"w{j + 1}"] = w
        params[f"b{j + 1}"] = b
    return params


def reference_forward(obs, params, act_high, act_low):
    h = jnp.maximum(obs @ params["w1"].T + params["b1"].T, 0.0)
    h = jnp.maximum(h @ params["w2"].T + params["b2"].T, 0.0)
    y = h @ params["w3"].T + params["b3"].T
    hi, lo = act_high.T, act_low.T
    return (hi - lo) * 0.5 * jnp.tanh(y) + (hi + lo) * 0.5


if __name__ == "__main__":
    key = jax.random.PRNGKey(0)
    k_obs, k_par, k_obs2, k_obs3 = jax.random.split(key, 4)

    # Small shapes consistent with DetermPolicy: obs_dim=8, hidden=(32, 32), act_dim=4.
    batch, obs_dim, act_dim = 16, 8, 4
    hidden_sizes = (32, 32)
    pi_sizes = [obs_dim] + list(hidden_sizes) + [act_dim]

    params = make_params(k_par, pi_sizes)
    obs = jax.random.normal(k_obs, (batch, obs_dim), jnp.float32)

    # Deterministic action limits (registered buffers in the torch module).
    act_high = jnp.array([1.0, 2.0, 1.5, 0.5], jnp.float32).reshape(act_dim, 1)
    act_low = jnp.array([-1.0, -1.0, -0.5, -0.5], jnp.float32).reshape(act_dim, 1)

    ref = reference_forward(obs, params, act_high, act_low)

    # Exact f32-matmul path: tight check against the pure-f32 reference.
    out_f32 = jax.block_until_ready(
        determ_policy_forward(obs, params, act_high, act_low,
                              matmul_dtype=jnp.float32))
    np.testing.assert_allclose(np.asarray(out_f32), np.asarray(ref),
                               rtol=1e-4, atol=1e-5)

    # Default bf16 fast path (f32 layer 1, bf16 layers 2-3, f32 accumulation).
    out_bf16 = jax.block_until_ready(
        determ_policy_forward(obs, params, act_high, act_low))
    np.testing.assert_allclose(np.asarray(out_bf16), np.asarray(ref),
                               rtol=5e-2, atol=5e-2)

    # Ragged batch with a >=2-step grid and a partial trailing block
    # (B=260 -> tile 256, grid 2; last block masked past row 260).
    obs2 = jax.random.normal(k_obs2, (260, obs_dim), jnp.float32)
    ref2 = reference_forward(obs2, params, act_high, act_low)
    out2 = jax.block_until_ready(
        determ_policy_forward(obs2, params, act_high, act_low,
                              matmul_dtype=jnp.float32))
    np.testing.assert_allclose(np.asarray(out2), np.asarray(ref2),
                               rtol=1e-4, atol=1e-5)

    # Larger batch exercising the auto-tile logic (B=1000 -> tile 512, grid 2)
    # and the lane-dense feature-major output option.
    obs3 = jax.random.normal(k_obs3, (1000, obs_dim), jnp.float32)
    ref3 = reference_forward(obs3, params, act_high, act_low)
    out3_fm = jax.block_until_ready(
        determ_policy_forward(obs3, params, act_high, act_low,
                              feature_major_output=True))
    np.testing.assert_allclose(np.asarray(out3_fm.T), np.asarray(ref3),
                               rtol=5e-2, atol=5e-2)

    print("KERNEL_OK")
</pallas_src>

<mosaic_0001>
module attributes {stable_mosaic.version = 11 : i64} {
  func.func @_determ_policy_kernel(%arg0: i32, %arg1: memref<128x8xf32, #tpu.memory_space<vmem>>, %arg2: memref<32x8xf32, #tpu.memory_space<vmem>>, %arg3: memref<32x1xf32, #tpu.memory_space<vmem>>, %arg4: memref<32x32xf32, #tpu.memory_space<vmem>>, %arg5: memref<32x1xf32, #tpu.memory_space<vmem>>, %arg6: memref<4x32xf32, #tpu.memory_space<vmem>>, %arg7: memref<4x1xf32, #tpu.memory_space<vmem>>, %arg8: memref<4x1xf32, #tpu.memory_space<vmem>>, %arg9: memref<4x1xf32, #tpu.memory_space<vmem>>, %arg10: memref<4x128xf32, #tpu.memory_space<vmem>>) attributes {dimension_semantics = [#tpu.dimension_semantics<parallel>], iteration_bounds = array<i64: 1>, scalar_prefetch = 0 : i64, scratch_operands = 0 : i64, tpu.core_type = #tpu.core_type<tc>, window_params = [{transform_indices = @transform_0, window_bounds = array<i64: 128, 8>}, {pipeline_mode = #tpu.pipeline_mode<synchronous>, transform_indices = @transform_1, window_bounds = array<i64: 32, 8>}, {pipeline_mode = #tpu.pipeline_mode<synchronous>, transform_indices = @transform_2, window_bounds = array<i64: 32, 1>}, {pipeline_mode = #tpu.pipeline_mode<synchronous>, transform_indices = @transform_3, window_bounds = array<i64: 32, 32>}, {pipeline_mode = #tpu.pipeline_mode<synchronous>, transform_indices = @transform_4, window_bounds = array<i64: 32, 1>}, {pipeline_mode = #tpu.pipeline_mode<synchronous>, transform_indices = @transform_5, window_bounds = array<i64: 4, 32>}, {pipeline_mode = #tpu.pipeline_mode<synchronous>, transform_indices = @transform_6, window_bounds = array<i64: 4, 1>}, {pipeline_mode = #tpu.pipeline_mode<synchronous>, transform_indices = @transform_7, window_bounds = array<i64: 4, 1>}, {pipeline_mode = #tpu.pipeline_mode<synchronous>, transform_indices = @transform_8, window_bounds = array<i64: 4, 1>}, {transform_indices = @transform_9, window_bounds = array<i64: 4, 128>}]} {
    %c0 = arith.constant 0 : index
    %c0_0 = arith.constant 0 : index
    %0 = vector.load %arg1[%c0, %c0_0] : memref<128x8xf32, #tpu.memory_space<vmem>>, vector<128x8xf32>
    %c0_1 = arith.constant 0 : index
    %c0_2 = arith.constant 0 : index
    %1 = vector.load %arg2[%c0_1, %c0_2] : memref<32x8xf32, #tpu.memory_space<vmem>>, vector<32x8xf32>
    %cst = arith.constant dense<0.000000e+00> : vector<32x128xf32>
    %2 = tpu.matmul %1, %0, %cst {dimension_numbers = #tpu.dot_dimension_numbers<[1], [1], [0], [0], [0, 0, 1, 0], [], []>} : vector<32x8xf32>, vector<128x8xf32>, vector<32x128xf32> -> vector<32x128xf32>
    %c0_3 = arith.constant 0 : index
    %c0_4 = arith.constant 0 : index
    %3 = vector.load %arg4[%c0_3, %c0_4] : memref<32x32xf32, #tpu.memory_space<vmem>>, vector<32x32xf32>
    %c0_5 = arith.constant 0 : index
    %c0_6 = arith.constant 0 : index
    %4 = vector.load %arg3[%c0_5, %c0_6] : memref<32x1xf32, #tpu.memory_space<vmem>>, vector<32x1xf32>
    %5 = vector.broadcast %4 : vector<32x1xf32> to vector<32x128xf32>
    %6 = arith.addf %2, %5 : vector<32x128xf32>
    %cst_7 = arith.constant 0.000000e+00 : f32
    %7 = vector.broadcast %cst_7 : f32 to vector<32x128xf32>
    %8 = arith.maximumf %6, %7 : vector<32x128xf32>
    %c0_8 = arith.constant 0 : index
    %c0_9 = arith.constant 0 : index
    %9 = vector.load %arg6[%c0_8, %c0_9] : memref<4x32xf32, #tpu.memory_space<vmem>>, vector<4x32xf32>
    %cst_10 = arith.constant dense<0.000000e+00> : vector<32x128xf32>
    %10 = tpu.matmul %3, %8, %cst_10 {dimension_numbers = #tpu.dot_dimension_numbers<[1], [0], [0], [1], [0, 0, 1, 1], [], []>} : vector<32x32xf32>, vector<32x128xf32>, vector<32x128xf32> -> vector<32x128xf32>
    %c0_11 = arith.constant 0 : index
    %c0_12 = arith.constant 0 : index
    %11 = vector.load %arg5[%c0_11, %c0_12] : memref<32x1xf32, #tpu.memory_space<vmem>>, vector<32x1xf32>
    %12 = vector.broadcast %11 : vector<32x1xf32> to vector<32x128xf32>
    %13 = arith.addf %10, %12 : vector<32x128xf32>
    %cst_13 = arith.constant 0.000000e+00 : f32
    %14 = vector.broadcast %cst_13 : f32 to vector<32x128xf32>
    %15 = arith.maximumf %13, %14 : vector<32x128xf32>
    %cst_14 = arith.constant dense<0.000000e+00> : vector<4x128xf32>
    %16 = tpu.matmul %9, %15, %cst_14 {dimension_numbers = #tpu.dot_dimension_numbers<[1], [0], [0], [1], [0, 0, 1, 1], [], []>} : vector<4x32xf32>, vector<32x128xf32>, vector<4x128xf32> -> vector<4x128xf32>
    %c0_15 = arith.constant 0 : index
    %c0_16 = arith.constant 0 : index
    %17 = vector.load %arg7[%c0_15, %c0_16] : memref<4x1xf32, #tpu.memory_space<vmem>>, vector<4x1xf32>
    %18 = vector.broadcast %17 : vector<4x1xf32> to vector<4x128xf32>
    %19 = arith.addf %16, %18 : vector<4x128xf32>
    %c0_17 = arith.constant 0 : index
    %c0_18 = arith.constant 0 : index
    %20 = vector.load %arg8[%c0_17, %c0_18] : memref<4x1xf32, #tpu.memory_space<vmem>>, vector<4x1xf32>
    %21 = math.tanh %19 : vector<4x128xf32>
    %22 = vector.broadcast %20 : vector<4x1xf32> to vector<4x128xf32>
    %23 = arith.mulf %22, %21 : vector<4x128xf32>
    %c0_19 = arith.constant 0 : index
    %c0_20 = arith.constant 0 : index
    %24 = vector.load %arg9[%c0_19, %c0_20] : memref<4x1xf32, #tpu.memory_space<vmem>>, vector<4x1xf32>
    %25 = vector.broadcast %24 : vector<4x1xf32> to vector<4x128xf32>
    %26 = arith.addf %23, %25 : vector<4x128xf32>
    %c0_21 = arith.constant 0 : index
    %c0_22 = arith.constant 0 : index
    %27 = vector.load %arg10[%c0_21, %c0_22] : memref<4x128xf32, #tpu.memory_space<vmem>>, vector<4x128xf32>
    tpu.vector_store %arg10[%c0_21, %c0_22], %26 {strides = array<i32>} : memref<4x128xf32, #tpu.memory_space<vmem>>, vector<4x128xf32>,
    return
  }
  func.func @transform_0(%arg0: i32) -> (i32, i32) {
    %c0_i32 = arith.constant 0 : i32
    %c0_i32_0 = arith.constant 0 : i32
    return %arg0, %c0_i32 : i32, i32
  }
  func.func @transform_1(%arg0: i32) -> (i32, i32) {
    %c0_i32 = arith.constant 0 : i32
    %c0_i32_0 = arith.constant 0 : i32
    %c0_i32_1 = arith.constant 0 : i32
    return %c0_i32, %c0_i32_0 : i32, i32
  }
  func.func @transform_2(%arg0: i32) -> (i32, i32) {
    %c0_i32 = arith.constant 0 : i32
    %c0_i32_0 = arith.constant 0 : i32
    %c0_i32_1 = arith.constant 0 : i32
    return %c0_i32, %c0_i32_0 : i32, i32
  }
  func.func @transform_3(%arg0: i32) -> (i32, i32) {
    %c0_i32 = arith.constant 0 : i32
    %c0_i32_0 = arith.constant 0 : i32
    %c0_i32_1 = arith.constant 0 : i32
    return %c0_i32, %c0_i32_0 : i32, i32
  }
  func.func @transform_4(%arg0: i32) -> (i32, i32) {
    %c0_i32 = arith.constant 0 : i32
    %c0_i32_0 = arith.constant 0 : i32
    %c0_i32_1 = arith.constant 0 : i32
    return %c0_i32, %c0_i32_0 : i32, i32
  }
  func.func @transform_5(%arg0: i32) -> (i32, i32) {
    %c0_i32 = arith.constant 0 : i32
    %c0_i32_0 = arith.constant 0 : i32
    %c0_i32_1 = arith.constant 0 : i32
    return %c0_i32, %c0_i32_0 : i32, i32
  }
  func.func @transform_6(%arg0: i32) -> (i32, i32) {
    %c0_i32 = arith.constant 0 : i32
    %c0_i32_0 = arith.constant 0 : i32
    %c0_i32_1 = arith.constant 0 : i32
    return %c0_i32, %c0_i32_0 : i32, i32
  }
  func.func @transform_7(%arg0: i32) -> (i32, i32) {
    %c0_i32 = arith.constant 0 : i32
    %c0_i32_0 = arith.constant 0 : i32
    %c0_i32_1 = arith.constant 0 : i32
    return %c0_i32, %c0_i32_0 : i32, i32
  }
  func.func @transform_8(%arg0: i32) -> (i32, i32) {
    %c0_i32 = arith.constant 0 : i32
    %c0_i32_0 = arith.constant 0 : i32
    %c0_i32_1 = arith.constant 0 : i32
    return %c0_i32, %c0_i32_0 : i32, i32
  }
  func.func @transform_9(%arg0: i32) -> (i32, i32) {
    %c0_i32 = arith.constant 0 : i32
    %c0_i32_0 = arith.constant 0 : i32
    return %c0_i32, %arg0 : i32, i32
  }
}

</mosaic_0001>

<llo_original>
// kernel: tpu_custom_call.1
$region0: #{tpu_custom_call.1}
  #allocation0 [shape = 'u32[]', space=smem, size = 0x4, offset = 0x4, fixed_abs, tag = 'smem constant byte address 0x4 - core index']
  #allocation1 [shape = 'u32[144,128]{1,0:T(1,128)}', space=vmem, size = 0x12000, scoped, tag = 'internal scratch']
  %s0 = inlined_call_operand.vmem [shape: f32[16,8], index: 0, kind: input, shape index: {}]
  %s1 = inlined_call_operand.vmem [shape: f32[32,8], index: 1, kind: input, shape index: {}]
  %s2 = inlined_call_operand.vmem [shape: f32[32,1], index: 2, kind: input, shape index: {}]
  %s3 = inlined_call_operand.vmem [shape: f32[32,32], index: 3, kind: input, shape index: {}]
  %s4 = inlined_call_operand.vmem [shape: f32[32,1], index: 4, kind: input, shape index: {}]
  %s5 = inlined_call_operand.vmem [shape: f32[4,32], index: 5, kind: input, shape index: {}]
  %s6 = inlined_call_operand.vmem [shape: f32[4,1], index: 6, kind: input, shape index: {}]
  %s7 = inlined_call_operand.vmem [shape: f32[4,1], index: 7, kind: input, shape index: {}]
  %s8 = inlined_call_operand.vmem [shape: f32[4,1], index: 8, kind: input, shape index: {}]
  %s9 = inlined_call_operand.hbm [shape: f32[4,16], index: 9, kind: output, shape index: {}]
  %s10 = sld [smem:[#allocation0]]
  $region46: #{tpu_custom_call.1} parent=0
    _
  %s12 = ssub.s32 1, %s10
  %s13 = scalar_select 0, %s12, %s10
  $region1: #{tpu_custom_call.1} parent=0
    #allocation2 [shape = 'u8[2048]{0}', space=vmem, size = 0x800, scoped, tag = 'output window, operand 0, single buffered']
    #allocation3 [shape = 's32[1]{0}', space=sflag, size = 0x4, scoped, tag = 'scoped memory for tpu_custom_call.1']
    %14 = vsyncpa [#allocation3], 0
    // Predicated region
    $region2: #{tpu_custom_call.1} parent=1 // pred_check
      _
    $region3: #{tpu_custom_call.1} parent=1 // pred_check_branch
      %16 = sbr.rel (0) target = $region5
    $region4: #{tpu_custom_call.1} parent=1 // pred_region
      _
    $region5: #{tpu_custom_call.1} parent=1 // pred_fallthru
      _
    // Predicated region
    $region6: #{tpu_custom_call.1} parent=1 // pred_check
      _
    $region7: #{tpu_custom_call.1} parent=1 // pred_check_branch
      %18 = sbr.rel (0) target = $region9
    $region8: #{tpu_custom_call.1} parent=1 // pred_region
      _
    $region9: #{tpu_custom_call.1} parent=1 // pred_fallthru
      _
    // Predicated region
    $region10: #{tpu_custom_call.1} parent=1 // pred_check
      _
    $region11: #{tpu_custom_call.1} parent=1 // pred_check_branch
      %20 = sbr.rel (0) target = $region13
    $region12: #{tpu_custom_call.1} parent=1 // pred_region
      _
    $region13: #{tpu_custom_call.1} parent=1 // pred_fallthru
      _
    // Predicated region
    $region14: #{tpu_custom_call.1} parent=1 // pred_check
      _
    $region15: #{tpu_custom_call.1} parent=1 // pred_check_branch
      %22 = sbr.rel (0) target = $region17
    $region16: #{tpu_custom_call.1} parent=1 // pred_region
      _
    $region17: #{tpu_custom_call.1} parent=1 // pred_fallthru
      _
    // Predicated region
    $region18: #{tpu_custom_call.1} parent=1 // pred_check
      _
    $region19: #{tpu_custom_call.1} parent=1 // pred_check_branch
      %24 = sbr.rel (0) target = $region21
    $region20: #{tpu_custom_call.1} parent=1 // pred_region
      _
    $region21: #{tpu_custom_call.1} parent=1 // pred_fallthru
      _
    // Predicated region
    $region22: #{tpu_custom_call.1} parent=1 // pred_check
      _
    $region23: #{tpu_custom_call.1} parent=1 // pred_check_branch
      %26 = sbr.rel (0) target = $region25
    $region24: #{tpu_custom_call.1} parent=1 // pred_region
      _
    $region25: #{tpu_custom_call.1} parent=1 // pred_fallthru
      _
    // Predicated region
    $region26: #{tpu_custom_call.1} parent=1 // pred_check
      _
    $region27: #{tpu_custom_call.1} parent=1 // pred_check_branch
      %28 = sbr.rel (0) target = $region29
    $region28: #{tpu_custom_call.1} parent=1 // pred_region
      _
    $region29: #{tpu_custom_call.1} parent=1 // pred_fallthru
      _
    // Predicated region
    $region30: #{tpu_custom_call.1} parent=1 // pred_check
      _
    $region31: #{tpu_custom_call.1} parent=1 // pred_check_branch
      %30 = sbr.rel (0) target = $region33
    $region32: #{tpu_custom_call.1} parent=1 // pred_region
      _
    $region33: #{tpu_custom_call.1} parent=1 // pred_fallthru
      _
    // Predicated region
    $region34: #{tpu_custom_call.1} parent=1 // pred_check
      _
    $region35: #{tpu_custom_call.1} parent=1 // pred_check_branch
      %32 = sbr.rel (0) target = $region37
    $region36: #{tpu_custom_call.1} parent=1 // pred_region
      _
    $region37: #{tpu_custom_call.1} parent=1 // pred_fallthru
      _
    %v33 = vld [vmem:[%s0] sm:$0xff]
    %v34 = vld [vmem:[%s0 + $0x8] sm:$0xff]
    %v35 = vld [vmem:[%s0 + $0x10] sm:$0xff]
    %v36 = vld [vmem:[%s0 + $0x18] sm:$0xff]
    %v37 = vld [vmem:[%s0 + $0x20] sm:$0xff]
    %v38 = vld [vmem:[%s0 + $0x28] sm:$0xff]
    %v39 = vld [vmem:[%s0 + $0x30] sm:$0xff]
    %v40 = vld [vmem:[%s0 + $0x38] sm:$0xff]
    %v41 = vld [vmem:[%s0 + $0x40] sm:$0xff]
    %v42 = vld [vmem:[%s0 + $0x48] sm:$0xff]
    %v43 = vld [vmem:[%s0 + $0x50] sm:$0xff]
    %v44 = vld [vmem:[%s0 + $0x58] sm:$0xff]
    %v45 = vld [vmem:[%s0 + $0x60] sm:$0xff]
    %v46 = vld [vmem:[%s0 + $0x68] sm:$0xff]
    %v47 = vld [vmem:[%s0 + $0x70] sm:$0xff]
    %v48 = vld [vmem:[%s0 + $0x78] sm:$0xff]
    %v49 = vld [vmem:[%s1] sm:$0xff]
    %v50 = vld [vmem:[%s1 + $0x8] sm:$0xff]
    %v51 = vld [vmem:[%s1 + $0x10] sm:$0xff]
    %v52 = vld [vmem:[%s1 + $0x18] sm:$0xff]
    %v53 = vld [vmem:[%s3] sm:$0xff]
    %v54 = vld [vmem:[%s3 + $0x8] sm:$0xff]
    %v55 = vld [vmem:[%s3 + $0x10] sm:$0xff]
    %v56 = vld [vmem:[%s3 + $0x18] sm:$0xff]
    %v57 = vld [vmem:[%s2] sm:$0xff]
    %v58 = vld [vmem:[%s2 + $0x8] sm:$0xff]
    %v59 = vld [vmem:[%s2 + $0x10] sm:$0xff]
    %v60 = vld [vmem:[%s2 + $0x18] sm:$0xff]
    %62 = vset.pattern.permute.xlu0 0
    %63 = vperm.xlu0 %62, %v57
    %v64 = vpop.permute.xlu0 %63
    %67 = vset.pattern.permute.xlu0 0
    %68 = vperm.xlu0 %67, %v58
    %v69 = vpop.permute.xlu0 %68
    %72 = vset.pattern.permute.xlu0 0
    %73 = vperm.xlu0 %72, %v59
    %v74 = vpop.permute.xlu0 %73
    %77 = vset.pattern.permute.xlu0 0
    %78 = vperm.xlu0 %77, %v60
    %v79 = vpop.permute.xlu0 %78
    %vm81 = vcmask 64512
    %v83 = vsel %vm81, %v49, 0
    %v86 = vsel %vm81, %v50, 0
    %v89 = vsel %vm81, %v51, 0
    %v92 = vsel %vm81, %v52, 0
    %v95 = vsel %vm81, %v33, 0
    %v98 = vsel %vm81, %v34, 0
    %v101 = vsel %vm81, %v35, 0
    %v104 = vsel %vm81, %v36, 0
    %v107 = vsel %vm81, %v37, 0
    %v110 = vsel %vm81, %v38, 0
    %v113 = vsel %vm81, %v39, 0
    %v116 = vsel %vm81, %v40, 0
    %v119 = vsel %vm81, %v41, 0
    %v122 = vsel %vm81, %v42, 0
    %v125 = vsel %vm81, %v43, 0
    %v128 = vsel %vm81, %v44, 0
    %v131 = vsel %vm81, %v45, 0
    %v134 = vsel %vm81, %v46, 0
    %v137 = vsel %vm81, %v47, 0
    %v140 = vsel %vm81, %v48, 0
    %142 = vmatprep.subr.mxu0 0.0
    %143 = vmatpush1.xpose.msra.mxu0 %v140
    %144 = vmatprep.subr.mxu0 0.0
    %145 = vmatpush1.xpose.msra.mxu0 %v137
    %146 = vmatprep.subr.mxu0 0.0
    %147 = vmatpush1.xpose.msra.mxu0 %v134
    %148 = vmatprep.subr.mxu0 0.0
    %149 = vmatpush1.xpose.msra.mxu0 %v131
    %150 = vmatprep.subr.mxu0 0.0
    %151 = vmatpush1.xpose.msra.mxu0 %v128
    %152 = vmatprep.subr.mxu0 0.0
    %153 = vmatpush1.xpose.msra.mxu0 %v125
    %154 = vmatprep.subr.mxu0 0.0
    %155 = vmatpush1.xpose.msra.mxu0 %v122
    %156 = vmatprep.subr.mxu0 0.0
    %157 = vmatpush1.xpose.msra.mxu0 %v119
    %158 = vmatprep.subr.mxu0 0.0
    %159 = vmatpush1.xpose.msra.mxu0 %v116
    %160 = vmatprep.subr.mxu0 0.0
    %161 = vmatpush1.xpose.msra.mxu0 %v113
    %162 = vmatprep.subr.mxu0 0.0
    %163 = vmatpush1.xpose.msra.mxu0 %v110
    %164 = vmatprep.subr.mxu0 0.0
    %165 = vmatpush1.xpose.msra.mxu0 %v107
    %166 = vmatprep.subr.mxu0 0.0
    %167 = vmatpush1.xpose.msra.mxu0 %v104
    %168 = vmatprep.subr.mxu0 0.0
    %169 = vmatpush1.xpose.msra.mxu0 %v101
    %170 = vmatprep.subr.mxu0 0.0
    %171 = vmatpush1.xpose.msra.mxu0 %v98
    %172 = vmatprep.subr.mxu0 0.0
    %173 = vmatpush1.xpose.msra.mxu0 %v95
    %174 = vmatprep.subr.mxu0 0.0
    %175 = vmatpush2.xpose.msra.mxu0 0.0
    %176 = vmatprep.subr.mxu0 0.0
    %177 = vmatpush2.xpose.msra.mxu0 0.0
    %178 = vmatprep.subr.mxu0 0.0
    %179 = vmatpush2.xpose.msra.mxu0 0.0
    %180 = vmatprep.subr.mxu0 0.0
    %181 = vmatpush2.xpose.msra.mxu0 0.0
    %182 = vmatprep.subr.mxu0 0.0
    %183 = vmatpush2.xpose.msra.mxu0 0.0
    %184 = vmatprep.subr.mxu0 0.0
    %185 = vmatpush2.xpose.msra.mxu0 0.0
    %186 = vmatprep.subr.mxu0 0.0
    %187 = vmatpush2.xpose.msra.mxu0 0.0
    %188 = vmatprep.subr.mxu0 0.0
    %189 = vmatpush2.xpose.msra.mxu0 0.0
    %190 = vmatprep.subr.mxu0 0.0
    %191 = vmatpush2.xpose.msra.mxu0 0.0
    %192 = vmatprep.subr.mxu0 0.0
    %193 = vmatpush2.xpose.msra.mxu0 0.0
    %194 = vmatprep.subr.mxu0 0.0
    %195 = vmatpush2.xpose.msra.mxu0 0.0
    %196 = vmatprep.subr.mxu0 0.0
    %197 = vmatpush2.xpose.msra.mxu0 0.0
    %198 = vmatprep.subr.mxu0 0.0
    %199 = vmatpush2.xpose.msra.mxu0 0.0
    %200 = vmatprep.subr.mxu0 0.0
    %201 = vmatpush2.xpose.msra.mxu0 0.0
    %202 = vmatprep.subr.mxu0 0.0
    %203 = vmatpush2.xpose.msra.mxu0 0.0
    %204 = vmatprep.subr.mxu0 0.0
    %205 = vmatpush2.xpose.msra.mxu0 0.0
    %206 = vmatprep.mubr.f32.mxu0 0.0
    %207 = vmatmul.mubr.f32.gmra.mxu0 %v83
    %v208 = vpop.f32.mrf.mxu0
    %v209 = vadd.f32 %v64, %v208
    %v210 = vpop.f32.mrf.mxu0
    %211 = vmatprep.mubr.f32.mxu0 0.0
    %212 = vmatmul.mubr.f32.gmra.mxu0 %v86
    %v213 = vpop.f32.mrf.mxu0
    %v214 = vadd.f32 %v69, %v213
    %v215 = vpop.f32.mrf.mxu0
    %216 = vmatprep.mubr.f32.mxu0 0.0
    %217 = vmatmul.mubr.f32.gmra.mxu0 %v89
    %v218 = vpop.f32.mrf.mxu0
    %v219 = vadd.f32 %v74, %v218
    %v220 = vpop.f32.mrf.mxu0
    %221 = vmatprep.mubr.f32.mxu0 0.0
    %222 = vmatmul.mubr.f32.gmra.mxu0 %v92
    %v223 = vpop.f32.mrf.mxu0
    %v224 = vadd.f32 %v79, %v223
    %v225 = vpop.f32.mrf.mxu0
    %226 = vdwg.mxu0
    %v227 = vmax.f32 %v209, 0.0
    %v228 = vmax.f32 %v214, 0.0
    %v229 = vmax.f32 %v219, 0.0
    %v230 = vmax.f32 %v224, 0.0
    %v231 = vld [vmem:[%s5] sm:$0xf]
    %v232 = vld [vmem:[%s4] sm:$0xff]
    %v233 = vld [vmem:[%s4 + $0x8] sm:$0xff]
    %v234 = vld [vmem:[%s4 + $0x10] sm:$0xff]
    %v235 = vld [vmem:[%s4 + $0x18] sm:$0xff]
    %237 = vset.pattern.permute.xlu0 0
    %238 = vperm.xlu0 %237, %v232
    %v239 = vpop.permute.xlu0 %238
    %242 = vset.pattern.permute.xlu0 0
    %243 = vperm.xlu0 %242, %v233
    %v244 = vpop.permute.xlu0 %243
    %247 = vset.pattern.permute.xlu0 0
    %248 = vperm.xlu0 %247, %v234
    %v249 = vpop.permute.xlu0 %248
    %252 = vset.pattern.permute.xlu0 0
    %253 = vperm.xlu0 %252, %v235
    %v254 = vpop.permute.xlu0 %253
    %vm256 = vcmask 261120
    %v258 = vsel %vm256, %v53, 0
    %v261 = vsel %vm256, %v54, 0
    %v264 = vsel %vm256, %v55, 0
    %v267 = vsel %vm256, %v56, 0
    %269 = vmatprep.subr.mxu0 0.0
    %270 = vmatpush1.msra.mxu0 0.0
    %271 = vmatprep.subr.mxu0 0.0
    %272 = vmatpush1.msra.mxu0 0.0
    %273 = vmatprep.subr.mxu0 0.0
    %274 = vmatpush1.msra.mxu0 0.0
    %275 = vmatprep.subr.mxu0 0.0
    %276 = vmatpush1.msra.mxu0 0.0
    %277 = vmatprep.subr.mxu0 0.0
    %278 = vmatpush1.msra.mxu0 0.0
    %279 = vmatprep.subr.mxu0 0.0
    %280 = vmatpush1.msra.mxu0 0.0
    %281 = vmatprep.subr.mxu0 0.0
    %282 = vmatpush1.msra.mxu0 0.0
    %283 = vmatprep.subr.mxu0 0.0
    %284 = vmatpush1.msra.mxu0 0.0
    %285 = vmatprep.subr.mxu0 0.0
    %286 = vmatpush1.msra.mxu0 0.0
    %287 = vmatprep.subr.mxu0 0.0
    %288 = vmatpush1.msra.mxu0 0.0
    %289 = vmatprep.subr.mxu0 0.0
    %290 = vmatpush1.msra.mxu0 0.0
    %291 = vmatprep.subr.mxu0 0.0
    %292 = vmatpush1.msra.mxu0 0.0
    %293 = vmatprep.subr.mxu0 0.0
    %294 = vmatpush1.msra.mxu0 %v230
    %295 = vmatprep.subr.mxu0 0.0
    %296 = vmatpush1.msra.mxu0 %v229
    %297 = vmatprep.subr.mxu0 0.0
    %298 = vmatpush1.msra.mxu0 %v228
    %299 = vmatprep.subr.mxu0 0.0
    %300 = vmatpush1.msra.mxu0 %v227
    %301 = vmatprep.subr.mxu0 0.0
    %302 = vmatpush2.msra.mxu0 0.0
    %303 = vmatprep.subr.mxu0 0.0
    %304 = vmatpush2.msra.mxu0 0.0
    %305 = vmatprep.subr.mxu0 0.0
    %306 = vmatpush2.msra.mxu0 0.0
    %307 = vmatprep.subr.mxu0 0.0
    %308 = vmatpush2.msra.mxu0 0.0
    %309 = vmatprep.subr.mxu0 0.0
    %310 = vmatpush2.msra.mxu0 0.0
    %311 = vmatprep.subr.mxu0 0.0
    %312 = vmatpush2.msra.mxu0 0.0
    %313 = vmatprep.subr.mxu0 0.0
    %314 = vmatpush2.msra.mxu0 0.0
    %315 = vmatprep.subr.mxu0 0.0
    %316 = vmatpush2.msra.mxu0 0.0
    %317 = vmatprep.subr.mxu0 0.0
    %318 = vmatpush2.msra.mxu0 0.0
    %319 = vmatprep.subr.mxu0 0.0
    %320 = vmatpush2.msra.mxu0 0.0
    %321 = vmatprep.subr.mxu0 0.0
    %322 = vmatpush2.msra.mxu0 0.0
    %323 = vmatprep.subr.mxu0 0.0
    %324 = vmatpush2.msra.mxu0 0.0
    %325 = vmatprep.subr.mxu0 0.0
    %326 = vmatpush2.msra.mxu0 0.0
    %327 = vmatprep.subr.mxu0 0.0
    %328 = vmatpush2.msra.mxu0 0.0
    %329 = vmatprep.subr.mxu0 0.0
    %330 = vmatpush2.msra.mxu0 0.0
    %331 = vmatprep.subr.mxu0 0.0
    %332 = vmatpush2.msra.mxu0 0.0
    %333 = vmatprep.mubr.f32.mxu0 0.0
    %334 = vmatmul.mubr.f32.gmra.mxu0 %v258
    %v335 = vpop.f32.mrf.mxu0
    %v336 = vadd.f32 %v239, %v335
    %v337 = vpop.f32.mrf.mxu0
    %338 = vmatprep.mubr.f32.mxu0 0.0
    %339 = vmatmul.mubr.f32.gmra.mxu0 %v261
    %v340 = vpop.f32.mrf.mxu0
    %v341 = vadd.f32 %v244, %v340
    %v342 = vpop.f32.mrf.mxu0
    %343 = vmatprep.mubr.f32.mxu0 0.0
    %344 = vmatmul.mubr.f32.gmra.mxu0 %v264
    %v345 = vpop.f32.mrf.mxu0
    %v346 = vadd.f32 %v249, %v345
    %v347 = vpop.f32.mrf.mxu0
    %348 = vmatprep.mubr.f32.mxu0 0.0
    %349 = vmatmul.mubr.f32.gmra.mxu0 %v267
    %v350 = vpop.f32.mrf.mxu0
    %v351 = vadd.f32 %v254, %v350
    %v352 = vpop.f32.mrf.mxu0
    %353 = vdwg.mxu0
    %v354 = vmax.f32 %v336, 0.0
    %v355 = vmax.f32 %v341, 0.0
    %v356 = vmax.f32 %v346, 0.0
    %v357 = vmax.f32 %v351, 0.0
    %v358 = vld [vmem:[%s6] sm:$0xf]
    %360 = vset.pattern.permute.xlu0 0
    %361 = vperm.xlu0 %360, %v358
    %v362 = vpop.permute.xlu0 %361
    %v365 = vsel %vm256, %v231, 0
    %367 = vmatprep.subr.mxu0 0.0
    %368 = vmatpush1.msra.mxu0 0.0
    %369 = vmatprep.subr.mxu0 0.0
    %370 = vmatpush1.msra.mxu0 0.0
    %371 = vmatprep.subr.mxu0 0.0
    %372 = vmatpush1.msra.mxu0 0.0
    %373 = vmatprep.subr.mxu0 0.0
    %374 = vmatpush1.msra.mxu0 0.0
    %375 = vmatprep.subr.mxu0 0.0
    %376 = vmatpush1.msra.mxu0 0.0
    %377 = vmatprep.subr.mxu0 0.0
    %378 = vmatpush1.msra.mxu0 0.0
    %379 = vmatprep.subr.mxu0 0.0
    %380 = vmatpush1.msra.mxu0 0.0
    %381 = vmatprep.subr.mxu0 0.0
    %382 = vmatpush1.msra.mxu0 0.0
    %383 = vmatprep.subr.mxu0 0.0
    %384 = vmatpush1.msra.mxu0 0.0
    %385 = vmatprep.subr.mxu0 0.0
    %386 = vmatpush1.msra.mxu0 0.0
    %387 = vmatprep.subr.mxu0 0.0
    %388 = vmatpush1.msra.mxu0 0.0
    %389 = vmatprep.subr.mxu0 0.0
    %390 = vmatpush1.msra.mxu0 0.0
    %391 = vmatprep.subr.mxu0 0.0
    %392 = vmatpush1.msra.mxu0 %v357
    %393 = vmatprep.subr.mxu0 0.0
    %394 = vmatpush1.msra.mxu0 %v356
    %395 = vmatprep.subr.mxu0 0.0
    %396 = vmatpush1.msra.mxu0 %v355
    %397 = vmatprep.subr.mxu0 0.0
    %398 = vmatpush1.msra.mxu0 %v354
    %399 = vmatprep.subr.mxu0 0.0
    %400 = vmatpush2.msra.mxu0 0.0
    %401 = vmatprep.subr.mxu0 0.0
    %402 = vmatpush2.msra.mxu0 0.0
    %403 = vmatprep.subr.mxu0 0.0
    %404 = vmatpush2.msra.mxu0 0.0
    %405 = vmatprep.subr.mxu0 0.0
    %406 = vmatpush2.msra.mxu0 0.0
    %407 = vmatprep.subr.mxu0 0.0
    %408 = vmatpush2.msra.mxu0 0.0
    %409 = vmatprep.subr.mxu0 0.0
    %410 = vmatpush2.msra.mxu0 0.0
    %411 = vmatprep.subr.mxu0 0.0
    %412 = vmatpush2.msra.mxu0 0.0
    %413 = vmatprep.subr.mxu0 0.0
    %414 = vmatpush2.msra.mxu0 0.0
    %415 = vmatprep.subr.mxu0 0.0
    %416 = vmatpush2.msra.mxu0 0.0
    %417 = vmatprep.subr.mxu0 0.0
    %418 = vmatpush2.msra.mxu0 0.0
    %419 = vmatprep.subr.mxu0 0.0
    %420 = vmatpush2.msra.mxu0 0.0
    %421 = vmatprep.subr.mxu0 0.0
    %422 = vmatpush2.msra.mxu0 0.0
    %423 = vmatprep.subr.mxu0 0.0
    %424 = vmatpush2.msra.mxu0 0.0
    %425 = vmatprep.subr.mxu0 0.0
    %426 = vmatpush2.msra.mxu0 0.0
    %427 = vmatprep.subr.mxu0 0.0
    %428 = vmatpush2.msra.mxu0 0.0
    %429 = vmatprep.subr.mxu0 0.0
    %430 = vmatpush2.msra.mxu0 0.0
    %431 = vmatprep.mubr.f32.mxu0 0.0
    %432 = vmatmul.mubr.f32.gmra.mxu0 %v365
    %v433 = vpop.f32.mrf.mxu0
    %v434 = vadd.f32 %v362, %v433
    %v435 = vpop.f32.mrf.mxu0
    %436 = vdwg.mxu0
    %v437 = vld [vmem:[%s7] sm:$0xf]
    %v438 = vtanh.pop %v434
    %440 = vset.pattern.permute.xlu0 0
    %441 = vperm.xlu0 %440, %v437
    %v442 = vpop.permute.xlu0 %441
    %v444 = vmul.f32 %v442, %v438
    %v445 = vld [vmem:[%s8] sm:$0xf]
    %447 = vset.pattern.permute.xlu0 0
    %448 = vperm.xlu0 %447, %v445
    %v449 = vpop.permute.xlu0 %448
    %v451 = vadd.f32 %v444, %v449
    %452 = vst [vmem:[#allocation2] sm:$0xf] %v451
    // Predicated region
    $region38: #{tpu_custom_call.1} parent=1 // pred_check
      _
    $region39: #{tpu_custom_call.1} parent=1 // pred_check_branch
      %454 = sbr.rel (0) target = $region41
    $region40: #{tpu_custom_call.1} parent=1 // pred_region
      %s456 = ssub.s32 64, 64
      %457 = vsyncadd [#allocation3], %s456
      %s459 = sshll.u32 [#allocation2], 4
      %s460 = int_to_ptr.vmem [resolvable:$true] %s459
      %462 = dma.vmem_to_hbm [thread:$0]  %s460, 64, %s9, [#allocation3]
    $region41: #{tpu_custom_call.1} parent=1 // pred_fallthru
      _
    // Predicated region
    $region42: #{tpu_custom_call.1} parent=1 // pred_check
      _
    $region43: #{tpu_custom_call.1} parent=1 // pred_check_branch
      %464 = sbr.rel (0) target = $region45
    $region44: #{tpu_custom_call.1} parent=1 // pred_region
      %465 = dma.done [#allocation3], 64
    $region45: #{tpu_custom_call.1} parent=1 // pred_fallthru
      _
    %466 = vsyncpa [#allocation3], 1

</llo_original>
